<compile_context>
chip_gen: v7x
topology: tpu7x:2x2x1
jax: 0.10.0
libtpu: 0.0.40
codegen_flags: <defaults>
</compile_context>

<pallas_src>
import jax
import jax.numpy as jnp
from jax.experimental import pallas as pl
from jax.experimental.pallas import tpu as pltpu

_LANE = 128
_SUBLANE = 8


def _round_up(x, m):
    return ((x + m - 1) // m) * m


def _pick_tile(n_aligned, max_tile, align):
    """Largest tile (multiple of `align`, <= max_tile) minimizing zero padding."""
    max_tile = max(align, (min(max_tile, n_aligned) // align) * align)
    if n_aligned <= max_tile:
        return n_aligned
    lo = max(align, (max_tile // 2) // align * align)
    best, best_cost = max_tile, None
    c = lo
    while c <= max_tile:
        padded = _round_up(n_aligned, c)
        cost = (padded, -c)          # least padding first, then biggest tile
        if best_cost is None or cost < best_cost:
            best, best_cost = c, cost
        c += align
    return best


def _vmem_limit_bytes():
    # Generation-aware scoped-VMEM limit: ~48 MiB on v7x (64 MiB physical),
    # up to ~96 MiB on v5e/v6e (128 MiB physical).
    cap = 64 * 1024 * 1024
    try:
        info = pltpu.get_tpu_info()
        cap = int(getattr(info, "vmem_capacity_bytes", cap) or cap)
    except Exception:
        pass
    return int(min(cap * 3 // 4, 100 * 1024 * 1024))


def _make_kernel(h_resident, tk):
    def kernel(adj_ref, h0_ref, m1w_ref, m1b_ref, m2w_ref, m2b_ref,
               o_ref, acc_ref):
        k = pl.program_id(1)

        @pl.when(k == 0)
        def _():
            acc_ref[...] = jnp.zeros_like(acc_ref)

        if h_resident:
            # h0 lives fully in VMEM; slice the k-th reduction chunk.
            start = pl.multiple_of(k * tk, _LANE)
            h_blk = h0_ref[pl.ds(start, tk), :]
        else:
            h_blk = h0_ref[...]

        # Aggregation over neighbours: acc[i] += adj[i, k] @ h0[k]
        # (bf16 operands, f32 accumulation on the MXU).
        acc_ref[...] += jnp.dot(adj_ref[...], h_blk,
                                preferred_element_type=jnp.float32)

        @pl.when(k == pl.num_programs(1) - 1)
        def _():
            # Epilogue once per row block: update_mlp (Linear -> ReLU -> Linear).
            h1 = jnp.dot(acc_ref[...], m1w_ref[...],
                         preferred_element_type=jnp.float32) + m1b_ref[...]
            h1 = jnp.maximum(h1, 0.0)
            out = jnp.dot(h1, m2w_ref[...],
                          preferred_element_type=jnp.float32) + m2b_ref[...]
            o_ref[...] = out.astype(o_ref.dtype)

    return kernel


def temporal_gcn_forward(node_features, adjacency_matrix, timestamps, params,
                         *, tm_max=512, tk_max=2048,
                         stream_dtype=jnp.bfloat16):
    f32 = jnp.float32
    N, _ = node_features.shape
    Fout = params["w"].shape[1]
    fout_pad = _round_up(Fout, _LANE)

    stream_bytes = jnp.dtype(stream_dtype).itemsize
    if stream_bytes > 2:
        tk_max = min(tk_max, 1024)   # keep adj tiles ~2 MiB even in f32

    x = node_features.astype(f32)
    ts2d = timestamps.astype(f32).reshape(N, 1)

    # Pre-aggregation features (tiny XLA matmuls, same op order as reference):
    #   h0 = x @ W + wb + ts @ tw + tb
    h0 = (x @ params["w"].astype(f32) + params["wb"].astype(f32)
          + ts2d @ params["tw"].astype(f32) + params["tb"].astype(f32))

    # ---- tiling ------------------------------------------------------------
    n_rows_al = _round_up(N, _SUBLANE)
    n_cols_al = _round_up(N, _LANE)

    # Keep >= 2 row blocks whenever possible so the "parallel" axis can shard
    # across v7x's two TensorCores (one harmless extra step on v5e/v6e).
    tm_cap = tm_max
    if n_rows_al >= 2 * _SUBLANE:
        tm_cap = min(tm_max,
                     max(_SUBLANE, _round_up((n_rows_al + 1) // 2, _SUBLANE)))
    tm = _pick_tile(n_rows_al, tm_cap, _SUBLANE)
    tk = _pick_tile(n_cols_al, tk_max, _LANE)

    n_r = _round_up(n_rows_al, tm)
    n_c = _round_up(n_cols_al, tk)
    grid = (n_r // tm, n_c // tk)

    vmem_limit = _vmem_limit_bytes()

    def pad2(a, r, c):
        return jnp.pad(a, ((0, r - a.shape[0]), (0, c - a.shape[1])))

    # Dominant N^2 stream in bf16 (cast before padding so the padded copy,
    # when needed at all, is half-size); f32 accumulation stays in the kernel.
    adj_p = pad2(adjacency_matrix.astype(stream_dtype), n_r, n_c)
    h0_p = pad2(h0, n_c, fout_pad).astype(stream_dtype)

    m1w_p = pad2(params["m1w"].astype(f32), fout_pad, fout_pad)
    m1b_p = pad2(params["m1b"].astype(f32), 1, fout_pad)
    m2w_p = pad2(params["m2w"].astype(f32), fout_pad, fout_pad)
    m2b_p = pad2(params["m2b"].astype(f32), 1, fout_pad)

    # Keep h0 VMEM-resident (fetched once, sliced per reduction step) when it
    # comfortably fits; otherwise stream (tk, fout_pad) blocks per k step.
    h_resident = (n_c * fout_pad * stream_bytes) <= vmem_limit // 4
    if h_resident:
        h0_spec = pl.BlockSpec((n_c, fout_pad), lambda i, k: (0, 0))
    else:
        h0_spec = pl.BlockSpec((tk, fout_pad), lambda i, k: (k, 0))

    resident = lambda shape: pl.BlockSpec(shape, lambda i, k: (0, 0))

    out_p = pl.pallas_call(
        _make_kernel(h_resident, tk),
        out_shape=jax.ShapeDtypeStruct((n_r, fout_pad), f32),
        grid=grid,
        in_specs=[
            pl.BlockSpec((tm, tk), lambda i, k: (i, k)),   # adjacency tile
            h0_spec,                                       # pre-agg features
            resident((fout_pad, fout_pad)),                # mlp layer 1 W
            resident((1, fout_pad)),                       # mlp layer 1 b
            resident((fout_pad, fout_pad)),                # mlp layer 2 W
            resident((1, fout_pad)),                       # mlp layer 2 b
        ],
        out_specs=pl.BlockSpec((tm, fout_pad), lambda i, k: (i, 0)),
        scratch_shapes=[pltpu.VMEM((tm, fout_pad), jnp.float32)],
        compiler_params=pltpu.CompilerParams(
            dimension_semantics=("parallel", "arbitrary"),
            vmem_limit_bytes=vmem_limit,
        ),
    )(adj_p, h0_p, m1w_p, m1b_p, m2w_p, m2b_p)

    return out_p[:N, :Fout]


def reference_forward(node_features, adjacency_matrix, timestamps, params):
    ts2d = timestamps.reshape(-1, 1)
    temporal = ts2d @ params["tw"] + params["tb"]
    h = node_features @ params["w"] + params["wb"] + temporal
    h = adjacency_matrix @ h
    h1 = jnp.maximum(h @ params["m1w"] + params["m1b"], 0.0)
    return h1 @ params["m2w"] + params["m2b"]


if __name__ == "__main__":
    N = 8          # number of nodes
    Fin = 16       # in_features
    Fout = 32      # out_features

    key = jax.random.PRNGKey(0)
    keys = jax.random.split(key, 14)

    # Deterministic synthetic parameters (nn.Linear shapes, stored transposed).
    params = {
        "w":   jax.random.normal(keys[0], (Fin, Fout), jnp.float32) * 0.1,
        "wb":  jax.random.normal(keys[1], (1, Fout), jnp.float32) * 0.1,
        "tw":  jax.random.normal(keys[2], (1, Fout), jnp.float32) * 0.1,
        "tb":  jax.random.normal(keys[3], (1, Fout), jnp.float32) * 0.1,
        "m1w": jax.random.normal(keys[4], (Fout, Fout), jnp.float32) * 0.1,
        "m1b": jax.random.normal(keys[5], (1, Fout), jnp.float32) * 0.1,
        "m2w": jax.random.normal(keys[6], (Fout, Fout), jnp.float32) * 0.1,
        "m2b": jax.random.normal(keys[7], (1, Fout), jnp.float32) * 0.1,
    }

    node_features = jax.random.normal(keys[8], (N, Fin), jnp.float32)
    adjacency_matrix = jax.random.uniform(keys[9], (N, N), jnp.float32)
    timestamps = jax.random.uniform(keys[10], (N,), jnp.float32)

    out = temporal_gcn_forward(node_features, adjacency_matrix, timestamps, params)
    out = jax.block_until_ready(out)

    ref = reference_forward(node_features, adjacency_matrix, timestamps, params)
    assert out.shape == (N, Fout)
    # bf16 streaming of adjacency / h0 -> looser tolerance than pure f32.
    assert jnp.allclose(out, ref, rtol=2e-2, atol=2e-2), "mismatch vs reference"

    print("KERNEL_OK")
</pallas_src>

<mosaic_0001>
module attributes {stable_mosaic.version = 11 : i64} {
  func.func @kernel(%arg0: i32, %arg1: i32, %arg2: memref<8x128xbf16, #tpu.memory_space<vmem>>, %arg3: memref<128x128xbf16, #tpu.memory_space<vmem>>, %arg4: memref<128x128xf32, #tpu.memory_space<vmem>>, %arg5: memref<1x128xf32, #tpu.memory_space<vmem>>, %arg6: memref<128x128xf32, #tpu.memory_space<vmem>>, %arg7: memref<1x128xf32, #tpu.memory_space<vmem>>, %arg8: memref<8x128xf32, #tpu.memory_space<vmem>>, %arg9: memref<8x128xf32, #tpu.memory_space<vmem>>) attributes {dimension_semantics = [#tpu.dimension_semantics<parallel>, #tpu.dimension_semantics<arbitrary>], iteration_bounds = array<i64: 1, 1>, scalar_prefetch = 0 : i64, scratch_operands = 1 : i64, tpu.core_type = #tpu.core_type<tc>, window_params = [{transform_indices = @transform_0, window_bounds = array<i64: 8, 128>}, {pipeline_mode = #tpu.pipeline_mode<synchronous>, transform_indices = @transform_1, window_bounds = array<i64: 128, 128>}, {pipeline_mode = #tpu.pipeline_mode<synchronous>, transform_indices = @transform_2, window_bounds = array<i64: 128, 128>}, {pipeline_mode = #tpu.pipeline_mode<synchronous>, transform_indices = @transform_3, window_bounds = array<i64: 1, 128>}, {pipeline_mode = #tpu.pipeline_mode<synchronous>, transform_indices = @transform_4, window_bounds = array<i64: 128, 128>}, {pipeline_mode = #tpu.pipeline_mode<synchronous>, transform_indices = @transform_5, window_bounds = array<i64: 1, 128>}, {transform_indices = @transform_6, window_bounds = array<i64: 8, 128>}]} {
    %c0_i32 = arith.constant 0 : i32
    %0 = arith.cmpi eq, %arg1, %c0_i32 : i32
    %1 = arith.extui %0 : i1 to i32
    %c0_i32_0 = arith.constant 0 : i32
    %2 = arith.cmpi ne, %1, %c0_i32_0 : i32
    scf.if %2 {
      %cst_9 = arith.constant 0.000000e+00 : f32
      %15 = vector.broadcast %cst_9 : f32 to vector<8x128xf32>
      %c0_10 = arith.constant 0 : index
      %c0_11 = arith.constant 0 : index
      %16 = vector.load %arg9[%c0_10, %c0_11] : memref<8x128xf32, #tpu.memory_space<vmem>>, vector<8x128xf32>
      tpu.vector_store %arg9[%c0_10, %c0_11], %15 {strides = array<i32>} : memref<8x128xf32, #tpu.memory_space<vmem>>, vector<8x128xf32>,
    } else {
    }
    %c128_i32 = arith.constant 128 : i32
    %3 = arith.muli %arg1, %c128_i32 : i32
    %4 = tpu.assume_multiple %3, 128 : i32
    %5 = arith.index_cast %4 : i32 to index
    %c0 = arith.constant 0 : index
    %6 = vector.load %arg3[%5, %c0] : memref<128x128xbf16, #tpu.memory_space<vmem>>, vector<128x128xbf16>
    %c0_1 = arith.constant 0 : index
    %c0_2 = arith.constant 0 : index
    %7 = vector.load %arg9[%c0_1, %c0_2] : memref<8x128xf32, #tpu.memory_space<vmem>>, vector<8x128xf32>
    %c0_3 = arith.constant 0 : index
    %c0_4 = arith.constant 0 : index
    %8 = vector.load %arg2[%c0_3, %c0_4] : memref<8x128xbf16, #tpu.memory_space<vmem>>, vector<8x128xbf16>
    %cst = arith.constant dense<0.000000e+00> : vector<8x128xf32>
    %9 = tpu.matmul %8, %6, %cst {dimension_numbers = #tpu.dot_dimension_numbers<[1], [0], [0], [1], [0, 0, 1, 1], [], []>} : vector<8x128xbf16>, vector<128x128xbf16>, vector<8x128xf32> -> vector<8x128xf32>
    %10 = arith.addf %7, %9 : vector<8x128xf32>
    %c0_5 = arith.constant 0 : index
    %c0_6 = arith.constant 0 : index
    %11 = vector.load %arg9[%c0_5, %c0_6] : memref<8x128xf32, #tpu.memory_space<vmem>>, vector<8x128xf32>
    tpu.vector_store %arg9[%c0_5, %c0_6], %10 {strides = array<i32>} : memref<8x128xf32, #tpu.memory_space<vmem>>, vector<8x128xf32>,
    %c0_i32_7 = arith.constant 0 : i32
    %12 = arith.cmpi eq, %arg1, %c0_i32_7 : i32
    %13 = arith.extui %12 : i1 to i32
    %c0_i32_8 = arith.constant 0 : i32
    %14 = arith.cmpi ne, %13, %c0_i32_8 : i32
    scf.if %14 {
      %c0_9 = arith.constant 0 : index
      %c0_10 = arith.constant 0 : index
      %15 = vector.load %arg9[%c0_9, %c0_10] : memref<8x128xf32, #tpu.memory_space<vmem>>, vector<8x128xf32>
      %c0_11 = arith.constant 0 : index
      %c0_12 = arith.constant 0 : index
      %16 = vector.load %arg4[%c0_11, %c0_12] : memref<128x128xf32, #tpu.memory_space<vmem>>, vector<128x128xf32>
      %cst_13 = arith.constant dense<0.000000e+00> : vector<8x128xf32>
      %17 = tpu.matmul %15, %16, %cst_13 {dimension_numbers = #tpu.dot_dimension_numbers<[1], [0], [0], [1], [0, 0, 1, 1], [], []>} : vector<8x128xf32>, vector<128x128xf32>, vector<8x128xf32> -> vector<8x128xf32>
      %c0_14 = arith.constant 0 : index
      %c0_15 = arith.constant 0 : index
      %18 = vector.load %arg5[%c0_14, %c0_15] : memref<1x128xf32, #tpu.memory_space<vmem>>, vector<1x128xf32>
      %19 = vector.broadcast %18 : vector<1x128xf32> to vector<8x128xf32>
      %20 = arith.addf %17, %19 : vector<8x128xf32>
      %cst_16 = arith.constant 0.000000e+00 : f32
      %21 = vector.broadcast %cst_16 : f32 to vector<8x128xf32>
      %22 = arith.maximumf %20, %21 : vector<8x128xf32>
      %c0_17 = arith.constant 0 : index
      %c0_18 = arith.constant 0 : index
      %23 = vector.load %arg6[%c0_17, %c0_18] : memref<128x128xf32, #tpu.memory_space<vmem>>, vector<128x128xf32>
      %cst_19 = arith.constant dense<0.000000e+00> : vector<8x128xf32>
      %24 = tpu.matmul %22, %23, %cst_19 {dimension_numbers = #tpu.dot_dimension_numbers<[1], [0], [0], [1], [0, 0, 1, 1], [], []>} : vector<8x128xf32>, vector<128x128xf32>, vector<8x128xf32> -> vector<8x128xf32>
      %c0_20 = arith.constant 0 : index
      %c0_21 = arith.constant 0 : index
      %25 = vector.load %arg7[%c0_20, %c0_21] : memref<1x128xf32, #tpu.memory_space<vmem>>, vector<1x128xf32>
      %26 = vector.broadcast %25 : vector<1x128xf32> to vector<8x128xf32>
      %27 = arith.addf %24, %26 : vector<8x128xf32>
      %c0_22 = arith.constant 0 : index
      %c0_23 = arith.constant 0 : index
      %28 = vector.load %arg8[%c0_22, %c0_23] : memref<8x128xf32, #tpu.memory_space<vmem>>, vector<8x128xf32>
      tpu.vector_store %arg8[%c0_22, %c0_23], %27 {strides = array<i32>} : memref<8x128xf32, #tpu.memory_space<vmem>>, vector<8x128xf32>,
    } else {
    }
    return
  }
  func.func @transform_0(%arg0: i32, %arg1: i32) -> (i32, i32) {
    %c0_i32 = arith.constant 0 : i32
    return %arg0, %arg1 : i32, i32
  }
  func.func @transform_1(%arg0: i32, %arg1: i32) -> (i32, i32) {
    %c0_i32 = arith.constant 0 : i32
    %c0_i32_0 = arith.constant 0 : i32
    %c0_i32_1 = arith.constant 0 : i32
    return %c0_i32, %c0_i32_0 : i32, i32
  }
  func.func @transform_2(%arg0: i32, %arg1: i32) -> (i32, i32) {
    %c0_i32 = arith.constant 0 : i32
    %c0_i32_0 = arith.constant 0 : i32
    %c0_i32_1 = arith.constant 0 : i32
    return %c0_i32, %c0_i32_0 : i32, i32
  }
  func.func @transform_3(%arg0: i32, %arg1: i32) -> (i32, i32) {
    %c0_i32 = arith.constant 0 : i32
    %c0_i32_0 = arith.constant 0 : i32
    %c0_i32_1 = arith.constant 0 : i32
    return %c0_i32, %c0_i32_0 : i32, i32
  }
  func.func @transform_4(%arg0: i32, %arg1: i32) -> (i32, i32) {
    %c0_i32 = arith.constant 0 : i32
    %c0_i32_0 = arith.constant 0 : i32
    %c0_i32_1 = arith.constant 0 : i32
    return %c0_i32, %c0_i32_0 : i32, i32
  }
  func.func @transform_5(%arg0: i32, %arg1: i32) -> (i32, i32) {
    %c0_i32 = arith.constant 0 : i32
    %c0_i32_0 = arith.constant 0 : i32
    %c0_i32_1 = arith.constant 0 : i32
    return %c0_i32, %c0_i32_0 : i32, i32
  }
  func.func @transform_6(%arg0: i32, %arg1: i32) -> (i32, i32) {
    %c0_i32 = arith.constant 0 : i32
    %c0_i32_0 = arith.constant 0 : i32
    return %arg0, %c0_i32 : i32, i32
  }
}

</mosaic_0001>

<llo_original>
// kernel: tpu_custom_call.1
$region0: #{tpu_custom_call.1}
  #allocation0 [shape = 'u32[]', space=smem, size = 0x4, offset = 0x4, fixed_abs, tag = 'smem constant byte address 0x4 - core index']
  #allocation1 [shape = 'u32[144,128]{1,0:T(1,128)}', space=vmem, size = 0x12000, scoped, tag = 'internal scratch']
  #allocation2 [shape = 'f32[8,128]{1,0:T(8,128)}', space=vmem, size = 0x1000, scoped, tag = 'scratch operand']
  %s0 = inlined_call_operand.hbm [shape: bf16[8,128], index: 0, kind: input, shape index: {}]
  %s1 = inlined_call_operand.hbm [shape: bf16[128,128], index: 1, kind: input, shape index: {}]
  %s2 = inlined_call_operand.hbm [shape: f32[128,128], index: 2, kind: input, shape index: {}]
  %s3 = inlined_call_operand.vmem [shape: f32[1,128], index: 3, kind: input, shape index: {}]
  %s4 = inlined_call_operand.hbm [shape: f32[128,128], index: 4, kind: input, shape index: {}]
  %s5 = inlined_call_operand.vmem [shape: f32[1,128], index: 5, kind: input, shape index: {}]
  %s6 = inlined_call_operand.hbm [shape: f32[8,128], index: 6, kind: output, shape index: {}]
  %s7 = sld [smem:[#allocation0]]
  $region58: #{tpu_custom_call.1} parent=0
    _
  %s9 = ssub.s32 1, %s7
  %s10 = scalar_select 0, %s9, %s7
  $region1: #{tpu_custom_call.1} parent=0
    #allocation3 [shape = 'u8[2048]{0}', space=vmem, size = 0x800, scoped, tag = 'input window, operand 0, single buffered']
    #allocation4 [shape = 's32[1]{0}', space=sflag, size = 0x4, scoped, tag = 'scoped memory for tpu_custom_call.1']
    #allocation5 [shape = 's32[1]{0}', space=sflag, size = 0x4, scoped, tag = 'scoped memory for tpu_custom_call.1']
    #allocation6 [shape = 'u8[32768]{0}', space=vmem, size = 0x8000, scoped, tag = 'input window, operand 1, single buffered']
    #allocation7 [shape = 's32[1]{0}', space=sflag, size = 0x4, scoped, tag = 'scoped memory for tpu_custom_call.1']
    #allocation8 [shape = 'u8[65536]{0}', space=vmem, size = 0x10000, scoped, tag = 'input window, operand 2, single buffered']
    #allocation9 [shape = 'u8[65536]{0}', space=vmem, size = 0x10000, scoped, tag = 'input window, operand 4, single buffered']
    #allocation10 [shape = 's32[1]{0}', space=sflag, size = 0x4, scoped, tag = 'scoped memory for tpu_custom_call.1']
    #allocation11 [shape = 'u8[4096]{0}', space=vmem, size = 0x1000, scoped, tag = 'output window, operand 0, single buffered']
    %11 = vsyncpa [#allocation4], 0
    %12 = vsyncpa [#allocation7], 0
    %13 = vsyncpa [#allocation10], 0
    %14 = vsyncpa [#allocation5], 0
    // Predicated region
    $region2: #{tpu_custom_call.1} parent=1 // pred_check
      _
    $region3: #{tpu_custom_call.1} parent=1 // pred_check_branch
      %16 = sbr.rel (0) target = $region5
    $region4: #{tpu_custom_call.1} parent=1 // pred_region
      %s18 = ssub.s32 64, 64
      %19 = vsyncadd [#allocation4], %s18
      %s21 = sshll.u32 [#allocation3], 4
      %s22 = int_to_ptr.vmem [resolvable:$true] %s21
      %24 = dma.hbm_to_vmem [thread:$0]  %s0, 64, %s22, [#allocation4]
    $region5: #{tpu_custom_call.1} parent=1 // pred_fallthru
      _
    // Predicated region
    $region6: #{tpu_custom_call.1} parent=1 // pred_check
      _
    $region7: #{tpu_custom_call.1} parent=1 // pred_check_branch
      %26 = sbr.rel (0) target = $region9
    $region8: #{tpu_custom_call.1} parent=1 // pred_region
      %s28 = ssub.s32 1024, 1024
      %29 = vsyncadd [#allocation7], %s28
      %s30 = sshll.u32 [#allocation6], 4
      %s31 = int_to_ptr.vmem [resolvable:$true] %s30
      %36 = dma.hbm_to_vmem [thread:$0]  %s1, 1024, %s31, [#allocation7], 64, 64, 4
    $region9: #{tpu_custom_call.1} parent=1 // pred_fallthru
      _
    // Predicated region
    $region10: #{tpu_custom_call.1} parent=1 // pred_check
      _
    $region11: #{tpu_custom_call.1} parent=1 // pred_check_branch
      %38 = sbr.rel (0) target = $region13
    $region12: #{tpu_custom_call.1} parent=1 // pred_region
      %s40 = ssub.s32 2048, 2048
      %41 = vsyncadd [#allocation7], %s40
      %s42 = sshll.u32 [#allocation8], 4
      %s43 = int_to_ptr.vmem [resolvable:$true] %s42
      %48 = dma.hbm_to_vmem [thread:$0]  %s2, 2048, %s43, [#allocation7], 128, 128, 8
    $region13: #{tpu_custom_call.1} parent=1 // pred_fallthru
      _
    // Predicated region
    $region14: #{tpu_custom_call.1} parent=1 // pred_check
      _
    $region15: #{tpu_custom_call.1} parent=1 // pred_check_branch
      %50 = sbr.rel (0) target = $region17
    $region16: #{tpu_custom_call.1} parent=1 // pred_region
      _
    $region17: #{tpu_custom_call.1} parent=1 // pred_fallthru
      _
    // Predicated region
    $region18: #{tpu_custom_call.1} parent=1 // pred_check
      _
    $region19: #{tpu_custom_call.1} parent=1 // pred_check_branch
      %52 = sbr.rel (0) target = $region21
    $region20: #{tpu_custom_call.1} parent=1 // pred_region
      %s54 = ssub.s32 2048, 2048
      %55 = vsyncadd [#allocation10], %s54
      %s56 = sshll.u32 [#allocation9], 4
      %s57 = int_to_ptr.vmem [resolvable:$true] %s56
      %62 = dma.hbm_to_vmem [thread:$0]  %s4, 2048, %s57, [#allocation10], 128, 128, 8
    $region21: #{tpu_custom_call.1} parent=1 // pred_fallthru
      _
    // Predicated region
    $region22: #{tpu_custom_call.1} parent=1 // pred_check
      _
    $region23: #{tpu_custom_call.1} parent=1 // pred_check_branch
      %64 = sbr.rel (0) target = $region25
    $region24: #{tpu_custom_call.1} parent=1 // pred_region
      _
    $region25: #{tpu_custom_call.1} parent=1 // pred_fallthru
      _
    // Predicated region
    $region26: #{tpu_custom_call.1} parent=1 // pred_check
      _
    $region27: #{tpu_custom_call.1} parent=1 // pred_check_branch
      %66 = sbr.rel (0) target = $region29
    $region28: #{tpu_custom_call.1} parent=1 // pred_region
      %67 = dma.done [#allocation4], 64
    $region29: #{tpu_custom_call.1} parent=1 // pred_fallthru
      _
    // Predicated region
    $region30: #{tpu_custom_call.1} parent=1 // pred_check
      _
    $region31: #{tpu_custom_call.1} parent=1 // pred_check_branch
      %69 = sbr.rel (0) target = $region33
    $region32: #{tpu_custom_call.1} parent=1 // pred_region
      %70 = dma.done [#allocation7], 1024
    $region33: #{tpu_custom_call.1} parent=1 // pred_fallthru
      _
    // Predicated region
    $region34: #{tpu_custom_call.1} parent=1 // pred_check
      _
    $region35: #{tpu_custom_call.1} parent=1 // pred_check_branch
      %72 = sbr.rel (0) target = $region37
    $region36: #{tpu_custom_call.1} parent=1 // pred_region
      %73 = dma.done [#allocation7], 2048
    $region37: #{tpu_custom_call.1} parent=1 // pred_fallthru
      _
    // Predicated region
    $region38: #{tpu_custom_call.1} parent=1 // pred_check
      _
    $region39: #{tpu_custom_call.1} parent=1 // pred_check_branch
      %75 = sbr.rel (0) target = $region41
    $region40: #{tpu_custom_call.1} parent=1 // pred_region
      %76 = dma.done [#allocation10], 2048
    $region41: #{tpu_custom_call.1} parent=1 // pred_fallthru
      _
    %p78 = scmp.eq.s32.totalorder 0, 0
    // Predicated region
    $region42: #{tpu_custom_call.1} parent=1 // pred_check
      %p79 = pneg %p78
    $region43: #{tpu_custom_call.1} parent=1 // pred_check_branch
      %81 = sbr.rel (%p79) target = $region45
    $region44: #{tpu_custom_call.1} parent=1 // pred_region
      %82 = vst [vmem:[#allocation2] sm:$0xff] 0.0
    $region45: #{tpu_custom_call.1} parent=1 // pred_fallthru
      _
    %s83 = smul.u32 0, 128
    %s84 = sshra.s32 %s83, 3
    %s85 = sand.u32 %s83, 7
    %s86 = smul.addr %s84, 4
    %s87 = scalar_lea.vmem [#allocation6], %s86
    %v88 = vld [vmem:[%s87] sm:$0xf]
    %v89 = vld [vmem:[%s87 + $0x4] sm:$0xf]
    %v90 = vld [vmem:[%s87 + $0x8] sm:$0xf]
    %v91 = vld [vmem:[%s87 + $0xc] sm:$0xf]
    %v92 = vld [vmem:[%s87 + $0x10] sm:$0xf]
    %v93 = vld [vmem:[%s87 + $0x14] sm:$0xf]
    %v94 = vld [vmem:[%s87 + $0x18] sm:$0xf]
    %v95 = vld [vmem:[%s87 + $0x1c] sm:$0xf]
    %v96 = vld [vmem:[%s87 + $0x20] sm:$0xf]
    %v97 = vld [vmem:[%s87 + $0x24] sm:$0xf]
    %v98 = vld [vmem:[%s87 + $0x28] sm:$0xf]
    %v99 = vld [vmem:[%s87 + $0x2c] sm:$0xf]
    %v100 = vld [vmem:[%s87 + $0x30] sm:$0xf]
    %v101 = vld [vmem:[%s87 + $0x34] sm:$0xf]
    %v102 = vld [vmem:[%s87 + $0x38] sm:$0xf]
    %v103 = vld [vmem:[%s87 + $0x3c] sm:$0xf]
    %v104 = vld [vmem:[#allocation2] sm:$0xff]
    %v105 = vld [vmem:[#allocation3] sm:$0xf]
    %v122 = vunpack.c.l.b16 %v88
    %v123 = vunpack.c.l.b16 %v89
    %v124 = vunpack.c.l.b16 %v90
    %v125 = vunpack.c.l.b16 %v91
    %v126 = vunpack.c.l.b16 %v92
    %v127 = vunpack.c.l.b16 %v93
    %v128 = vunpack.c.l.b16 %v94
    %v129 = vunpack.c.l.b16 %v95
    %v130 = vunpack.c.l.b16 %v96
    %v131 = vunpack.c.l.b16 %v97
    %v132 = vunpack.c.l.b16 %v98
    %v133 = vunpack.c.l.b16 %v99
    %v134 = vunpack.c.l.b16 %v100
    %v135 = vunpack.c.l.b16 %v101
    %v136 = vunpack.c.l.b16 %v102
    %v137 = vunpack.c.l.b16 %v103
    %v138 = vpack.c.b16 %v123, %v122
    %v139 = vpack.c.b16 %v125, %v124
    %v140 = vpack.c.b16 %v127, %v126
    %v141 = vpack.c.b16 %v129, %v128
    %v142 = vpack.c.b16 %v131, %v130
    %v143 = vpack.c.b16 %v133, %v132
    %v144 = vpack.c.b16 %v135, %v134
    %v145 = vpack.c.b16 %v137, %v136
    %154 = vmatprep.subr.bf16.mxu0 0
    %155 = vmatpush1.bf16.msra.mxu0 %v138
    %156 = vmatprep.subr.bf16.mxu0 0
    %157 = vmatpush1.bf16.msra.mxu0 %v139
    %158 = vmatprep.subr.bf16.mxu0 0
    %159 = vmatpush1.bf16.msra.mxu0 %v140
    %160 = vmatprep.subr.bf16.mxu0 0
    %161 = vmatpush1.bf16.msra.mxu0 %v141
    %162 = vmatprep.subr.bf16.mxu0 0
    %163 = vmatpush1.bf16.msra.mxu0 %v142
    %164 = vmatprep.subr.bf16.mxu0 0
    %165 = vmatpush1.bf16.msra.mxu0 %v143
    %166 = vmatprep.subr.bf16.mxu0 0
    %167 = vmatpush1.bf16.msra.mxu0 %v144
    %168 = vmatprep.subr.bf16.mxu0 0
    %169 = vmatpush1.bf16.msra.mxu0 %v145
    %170 = vmatprep.subr.bf16.mxu0 0
    %171 = vmatpush1.bf16.msra.mxu0 0
    %172 = vmatprep.subr.bf16.mxu0 0
    %173 = vmatpush1.bf16.msra.mxu0 0
    %174 = vmatprep.subr.bf16.mxu0 0
    %175 = vmatpush1.bf16.msra.mxu0 0
    %176 = vmatprep.subr.bf16.mxu0 0
    %177 = vmatpush1.bf16.msra.mxu0 0
    %178 = vmatprep.subr.bf16.mxu0 0
    %179 = vmatpush1.bf16.msra.mxu0 0
    %180 = vmatprep.subr.bf16.mxu0 0
    %181 = vmatpush1.bf16.msra.mxu0 0
    %182 = vmatprep.subr.bf16.mxu0 0
    %183 = vmatpush1.bf16.msra.mxu0 0
    %184 = vmatprep.subr.bf16.mxu0 0
    %185 = vmatpush1.bf16.msra.mxu0 0
    %186 = vmatprep.mubr.bf16.mxu0 0
    %187 = vmatmul.mubr.bf16.gmra.mrb[0].mxu0 %v105
    %v188 = vpop.f32.mrb[0].mxu0
    %v189 = vadd.f32 0.0, %v188
    %v190 = vpop.f32.mrb[0].mxu0
    %v191 = vpop.f32.mrb[0].mxu0
    %v192 = vpop.f32.mrb[0].mxu0
    %193 = vdwg.mxu0
    %v194 = vadd.f32 %v104, %v189
    %195 = vst [vmem:[#allocation2] sm:$0xff] %v194
    // Predicated region
    $region46: #{tpu_custom_call.1} parent=1 // pred_check
      %p196 = pneg %p78
    $region47: #{tpu_custom_call.1} parent=1 // pred_check_branch
      %198 = sbr.rel (%p196) target = $region49
    $region48: #{tpu_custom_call.1} parent=1 // pred_region
      %v199 = vld [vmem:[#allocation2] sm:$0xff]
      %v200 = vld [vmem:[#allocation8] sm:$0xff]
      %v201 = vld [vmem:[#allocation8 + $0x8] sm:$0xff]
      %v202 = vld [vmem:[#allocation8 + $0x10] sm:$0xff]
      %v203 = vld [vmem:[#allocation8 + $0x18] sm:$0xff]
      %v204 = vld [vmem:[#allocation8 + $0x20] sm:$0xff]
      %v205 = vld [vmem:[#allocation8 + $0x28] sm:$0xff]
      %v206 = vld [vmem:[#allocation8 + $0x30] sm:$0xff]
      %v207 = vld [vmem:[#allocation8 + $0x38] sm:$0xff]
      %v208 = vld [vmem:[#allocation8 + $0x40] sm:$0xff]
      %v209 = vld [vmem:[#allocation8 + $0x48] sm:$0xff]
      %v210 = vld [vmem:[#allocation8 + $0x50] sm:$0xff]
      %v211 = vld [vmem:[#allocation8 + $0x58] sm:$0xff]
      %v212 = vld [vmem:[#allocation8 + $0x60] sm:$0xff]
      %v213 = vld [vmem:[#allocation8 + $0x68] sm:$0xff]
      %v214 = vld [vmem:[#allocation8 + $0x70] sm:$0xff]
      %v215 = vld [vmem:[#allocation8 + $0x78] sm:$0xff]
      %v216 = vld [vmem:[%s3] sm:$0x1]
      %v218 = vlaneseq
      %v219 = vshrl.u32 %v218, 7
      %v220 = vsub.s32 0, %v219
      %v221 = vrot.slane %v216, %v220
      %223 = vmatprep.subr.mxu0 0.0
      %224 = vmatpush1.msra.mxu0 %v200
      %225 = vmatprep.subr.mxu0 0.0
      %226 = vmatpush1.msra.mxu0 %v201
      %227 = vmatprep.subr.mxu0 0.0
      %228 = vmatpush1.msra.mxu0 %v202
      %229 = vmatprep.subr.mxu0 0.0
      %230 = vmatpush1.msra.mxu0 %v203
      %231 = vmatprep.subr.mxu0 0.0
      %232 = vmatpush1.msra.mxu0 %v204
      %233 = vmatprep.subr.mxu0 0.0
      %234 = vmatpush1.msra.mxu0 %v205
      %235 = vmatprep.subr.mxu0 0.0
      %236 = vmatpush1.msra.mxu0 %v206
      %237 = vmatprep.subr.mxu0 0.0
      %238 = vmatpush1.msra.mxu0 %v207
      %239 = vmatprep.subr.mxu0 0.0
      %240 = vmatpush1.msra.mxu0 %v208
      %241 = vmatprep.subr.mxu0 0.0
      %242 = vmatpush1.msra.mxu0 %v209
      %243 = vmatprep.subr.mxu0 0.0
      %244 = vmatpush1.msra.mxu0 %v210
      %245 = vmatprep.subr.mxu0 0.0
      %246 = vmatpush1.msra.mxu0 %v211
      %247 = vmatprep.subr.mxu0 0.0
      %248 = vmatpush1.msra.mxu0 %v212
      %249 = vmatprep.subr.mxu0 0.0
      %250 = vmatpush1.msra.mxu0 %v213
      %251 = vmatprep.subr.mxu0 0.0
      %252 = vmatpush1.msra.mxu0 %v214
      %253 = vmatprep.subr.mxu0 0.0
      %254 = vmatpush1.msra.mxu0 %v215
      %255 = vmatprep.subr.mxu0 0.0
      %256 = vmatpush1.msra.mxu0 0.0
      %257 = vmatprep.subr.mxu0 0.0
      %258 = vmatpush1.msra.mxu0 0.0
      %259 = vmatprep.subr.mxu0 0.0
      %260 = vmatpush1.msra.mxu0 0.0
      %261 = vmatprep.subr.mxu0 0.0
      %262 = vmatpush1.msra.mxu0 0.0
      %263 = vmatprep.subr.mxu0 0.0
      %264 = vmatpush1.msra.mxu0 0.0
      %265 = vmatprep.subr.mxu0 0.0
      %266 = vmatpush1.msra.mxu0 0.0
      %267 = vmatprep.subr.mxu0 0.0
      %268 = vmatpush1.msra.mxu0 0.0
      %269 = vmatprep.subr.mxu0 0.0
      %270 = vmatpush1.msra.mxu0 0.0
      %271 = vmatprep.subr.mxu0 0.0
      %272 = vmatpush1.msra.mxu0 0.0
      %273 = vmatprep.subr.mxu0 0.0
      %274 = vmatpush1.msra.mxu0 0.0
      %275 = vmatprep.subr.mxu0 0.0
      %276 = vmatpush1.msra.mxu0 0.0
      %277 = vmatprep.subr.mxu0 0.0
      %278 = vmatpush1.msra.mxu0 0.0
      %279 = vmatprep.subr.mxu0 0.0
      %280 = vmatpush1.msra.mxu0 0.0
      %281 = vmatprep.subr.mxu0 0.0
      %282 = vmatpush1.msra.mxu0 0.0
      %283 = vmatprep.subr.mxu0 0.0
      %284 = vmatpush1.msra.mxu0 0.0
      %285 = vmatprep.subr.mxu0 0.0
      %286 = vmatpush1.msra.mxu0 0.0
      %287 = vmatprep.mubr.f32.mxu0 0.0
      %288 = vmatmul.mubr.f32.gmra.mrb[0].mxu0 %v199
      %v289 = vpop.f32.mrb[0].mxu0
      %v290 = vadd.f32 %v221, %v289
      %v291 = vpop.f32.mrb[0].mxu0
      %292 = vdwg.mxu0
      %v293 = vmax.f32 %v290, 0.0
      %v294 = vld [vmem:[#allocation9] sm:$0xff]
      %v295 = vld [vmem:[#allocation9 + $0x8] sm:$0xff]
      %v296 = vld [vmem:[#allocation9 + $0x10] sm:$0xff]
      %v297 = vld [vmem:[#allocation9 + $0x18] sm:$0xff]
      %v298 = vld [vmem:[#allocation9 + $0x20] sm:$0xff]
      %v299 = vld [vmem:[#allocation9 + $0x28] sm:$0xff]
      %v300 = vld [vmem:[#allocation9 + $0x30] sm:$0xff]
      %v301 = vld [vmem:[#allocation9 + $0x38] sm:$0xff]
      %v302 = vld [vmem:[#allocation9 + $0x40] sm:$0xff]
      %v303 = vld [vmem:[#allocation9 + $0x48] sm:$0xff]
      %v304 = vld [vmem:[#allocation9 + $0x50] sm:$0xff]
      %v305 = vld [vmem:[#allocation9 + $0x58] sm:$0xff]
      %v306 = vld [vmem:[#allocation9 + $0x60] sm:$0xff]
      %v307 = vld [vmem:[#allocation9 + $0x68] sm:$0xff]
      %v308 = vld [vmem:[#allocation9 + $0x70] sm:$0xff]
      %v309 = vld [vmem:[#allocation9 + $0x78] sm:$0xff]
      %v310 = vld [vmem:[%s5] sm:$0x1]
      %v312 = vlaneseq
      %v313 = vshrl.u32 %v312, 7
      %v314 = vsub.s32 0, %v313
      %v315 = vrot.slane %v310, %v314
      %317 = vmatprep.subr.mxu0 0.0
      %318 = vmatpush1.msra.mxu0 %v294
      %319 = vmatprep.subr.mxu0 0.0
      %320 = vmatpush1.msra.mxu0 %v295
      %321 = vmatprep.subr.mxu0 0.0
      %322 = vmatpush1.msra.mxu0 %v296
      %323 = vmatprep.subr.mxu0 0.0
      %324 = vmatpush1.msra.mxu0 %v297
      %325 = vmatprep.subr.mxu0 0.0
      %326 = vmatpush1.msra.mxu0 %v298
      %327 = vmatprep.subr.mxu0 0.0
      %328 = vmatpush1.msra.mxu0 %v299
      %329 = vmatprep.subr.mxu0 0.0
      %330 = vmatpush1.msra.mxu0 %v300
      %331 = vmatprep.subr.mxu0 0.0
      %332 = vmatpush1.msra.mxu0 %v301
      %333 = vmatprep.subr.mxu0 0.0
      %334 = vmatpush1.msra.mxu0 %v302
      %335 = vmatprep.subr.mxu0 0.0
      %336 = vmatpush1.msra.mxu0 %v303
      %337 = vmatprep.subr.mxu0 0.0
      %338 = vmatpush1.msra.mxu0 %v304
      %339 = vmatprep.subr.mxu0 0.0
      %340 = vmatpush1.msra.mxu0 %v305
      %341 = vmatprep.subr.mxu0 0.0
      %342 = vmatpush1.msra.mxu0 %v306
      %343 = vmatprep.subr.mxu0 0.0
      %344 = vmatpush1.msra.mxu0 %v307
      %345 = vmatprep.subr.mxu0 0.0
      %346 = vmatpush1.msra.mxu0 %v308
      %347 = vmatprep.subr.mxu0 0.0
      %348 = vmatpush1.msra.mxu0 %v309
      %349 = vmatprep.subr.mxu0 0.0
      %350 = vmatpush1.msra.mxu0 0.0
      %351 = vmatprep.subr.mxu0 0.0
      %352 = vmatpush1.msra.mxu0 0.0
      %353 = vmatprep.subr.mxu0 0.0
      %354 = vmatpush1.msra.mxu0 0.0
      %355 = vmatprep.subr.mxu0 0.0
      %356 = vmatpush1.msra.mxu0 0.0
      %357 = vmatprep.subr.mxu0 0.0
      %358 = vmatpush1.msra.mxu0 0.0
      %359 = vmatprep.subr.mxu0 0.0
      %360 = vmatpush1.msra.mxu0 0.0
      %361 = vmatprep.subr.mxu0 0.0
      %362 = vmatpush1.msra.mxu0 0.0
      %363 = vmatprep.subr.mxu0 0.0
      %364 = vmatpush1.msra.mxu0 0.0
      %365 = vmatprep.subr.mxu0 0.0
      %366 = vmatpush1.msra.mxu0 0.0
      %367 = vmatprep.subr.mxu0 0.0
      %368 = vmatpush1.msra.mxu0 0.0
      %369 = vmatprep.subr.mxu0 0.0
      %370 = vmatpush1.msra.mxu0 0.0
      %371 = vmatprep.subr.mxu0 0.0
      %372 = vmatpush1.msra.mxu0 0.0
      %373 = vmatprep.subr.mxu0 0.0
      %374 = vmatpush1.msra.mxu0 0.0
      %375 = vmatprep.subr.mxu0 0.0
      %376 = vmatpush1.msra.mxu0 0.0
      %377 = vmatprep.subr.mxu0 0.0
      %378 = vmatpush1.msra.mxu0 0.0
      %379 = vmatprep.subr.mxu0 0.0
      %380 = vmatpush1.msra.mxu0 0.0
      %381 = vmatprep.mubr.f32.mxu0 0.0
      %382 = vmatmul.mubr.f32.gmra.mrb[0].mxu0 %v293
      %v383 = vpop.f32.mrb[0].mxu0
      %v384 = vadd.f32 %v315, %v383
      %v385 = vpop.f32.mrb[0].mxu0
      %386 = vdwg.mxu0
      %387 = vst [vmem:[#allocation11] sm:$0xff] %v384
    $region49: #{tpu_custom_call.1} parent=1 // pred_fallthru
      _
    // Predicated region
    $region50: #{tpu_custom_call.1} parent=1 // pred_check
      _
    $region51: #{tpu_custom_call.1} parent=1 // pred_check_branch
      %389 = sbr.rel (0) target = $region53
    $region52: #{tpu_custom_call.1} parent=1 // pred_region
      %s391 = ssub.s32 128, 128
      %392 = vsyncadd [#allocation5], %s391
      %s394 = sshll.u32 [#allocation11], 4
      %s395 = int_to_ptr.vmem [resolvable:$true] %s394
      %397 = dma.vmem_to_hbm [thread:$0]  %s395, 128, %s6, [#allocation5]
    $region53: #{tpu_custom_call.1} parent=1 // pred_fallthru
      _
    // Predicated region
    $region54: #{tpu_custom_call.1} parent=1 // pred_check
      _
    $region55: #{tpu_custom_call.1} parent=1 // pred_check_branch
      %399 = sbr.rel (0) target = $region57
    $region56: #{tpu_custom_call.1} parent=1 // pred_region
      %400 = dma.done [#allocation5], 128
    $region57: #{tpu_custom_call.1} parent=1 // pred_fallthru
      _
    %401 = vsyncpa [#allocation4], 1
    %402 = vsyncpa [#allocation7], 1
    %403 = vsyncpa [#allocation10], 1
    %404 = vsyncpa [#allocation5], 1

</llo_original>
